<compile_context>
chip_gen: v5e
topology: v5e:2x2
jax: 0.10.0
libtpu: 0.0.40
codegen_flags: <defaults>
</compile_context>

<pallas_src>
import jax
import jax.numpy as jnp
from jax.experimental import pallas as pl

# Problem sizes (consistent with a Conv1d(C_in=4, C_out=8, kernel_size=3, padding=1)).
N, C_IN, C_OUT, K, PAD, L = 2, 4, 8, 3, 1, 16
NL = N * L
EPS = 1e-5
# TODO(synk): top_k relevance filter not implemented (module default top_k=0.0 -> disabled).


def lrp_conv1d_kernel(a_ref, r_ref, wcat_ref, wcat_t_ref, out_ref):
    """Single-step kernel over the whole (tiny) problem, batch folded onto lanes.

    a_ref      : (C_in,  N*L)      activations,        a2[ci, n*L + l] = a[n, ci, l]
    r_ref      : (C_out, N*L)      incoming relevance, r2[co, n*L + l] = r[n, co, l]
    wcat_ref   : (C_out, K*C_in)   W+[co, t*C_in + ci] = clamp(W)[co, ci, t]
    wcat_t_ref : (K*C_in, C_out)   transpose of the above (pre-packed)
    out_ref    : (C_in,  N*L)      outgoing relevance (same lane-folded layout)
    """
    a2 = a_ref[...]                      # (C_in,  N*L)
    r2 = r_ref[...]                      # (C_out, N*L)
    w_cat = wcat_ref[...]                # (C_out, K*C_in)
    w_cat_t = wcat_t_ref[...]            # (K*C_in, C_out)

    zcol = jnp.zeros((C_IN, 1), jnp.float32)

    # Per-sample boundary masks over the folded lane axis (l == 0 / l == L-1).
    col = jax.lax.broadcasted_iota(jnp.int32, (C_IN, NL), 1)
    pos = col % L
    not_first = pos != 0
    not_last = pos != (L - 1)

    # ---- im2col: shifted activations with per-sample zero padding ----
    # tap t=0 needs a[.., l-1], tap t=2 needs a[.., l+1]; lane-shift the whole
    # folded array and mask the sample boundaries to zero.
    a_m1 = jnp.where(not_first, jnp.concatenate([zcol, a2[:, :NL - 1]], axis=1), 0.0)
    a_p1 = jnp.where(not_last, jnp.concatenate([a2[:, 1:], zcol], axis=1), 0.0)
    a_col = jnp.concatenate([a_m1, a2, a_p1], axis=0)            # (K*C_in, N*L)

    # ---- forward conv as one matmul:  z = W_cat @ A_col + eps ----
    z = jnp.dot(w_cat, a_col, preferred_element_type=jnp.float32) + EPS   # (C_out, N*L)
    s = r2 / z

    # ---- transposed conv (input gradient) as one matmul:  G = W_cat^T @ s ----
    g = jnp.dot(w_cat_t, s, preferred_element_type=jnp.float32)          # (K*C_in, N*L)

    # ---- realign tap contributions: c[ci, l] = g0[ci, l+1] + g1[ci, l] + g2[ci, l-1] ----
    g0 = g[0 * C_IN:1 * C_IN]
    g1 = g[1 * C_IN:2 * C_IN]
    g2 = g[2 * C_IN:3 * C_IN]
    c = (jnp.where(not_last, jnp.concatenate([g0[:, 1:], zcol], axis=1), 0.0)
         + g1
         + jnp.where(not_first, jnp.concatenate([zcol, g2[:, :NL - 1]], axis=1), 0.0))

    # Single lane-folded store.
    out_ref[...] = a2 * c


def lrp_conv1d(a, r, w):
    """a: (N, C_in, L) f32, r: (N, C_out, L) f32, w: raw Conv1d weight (C_out, C_in, K) f32.

    The z_plus clamp (W+ = clamp(W, 0)) is applied here, matching the PyTorch module.
    Batch folding / weight packing are layout plumbing done wrapper-side.
    """
    w_plus = jnp.clip(w, 0.0, None)
    # W_cat[co, t*C_in + ci] = W+[co, ci, t]; pre-pack both layouts wrapper-side.
    w_cat = jnp.transpose(w_plus, (0, 2, 1)).reshape(C_OUT, K * C_IN)
    w_cat_t = w_cat.T
    # Fold batch onto lanes: (N, C, L) -> (C, N*L).
    a2 = jnp.transpose(a, (1, 0, 2)).reshape(C_IN, NL)
    r2 = jnp.transpose(r, (1, 0, 2)).reshape(C_OUT, NL)

    out2 = pl.pallas_call(
        lrp_conv1d_kernel,
        out_shape=jax.ShapeDtypeStruct((C_IN, NL), jnp.float32),
        grid_spec=pl.GridSpec(
            grid=(1,),
            in_specs=[
                pl.BlockSpec((C_IN, NL), lambda i: (0, 0)),
                pl.BlockSpec((C_OUT, NL), lambda i: (0, 0)),
                pl.BlockSpec((C_OUT, K * C_IN), lambda i: (0, 0)),
                pl.BlockSpec((K * C_IN, C_OUT), lambda i: (0, 0)),
            ],
            out_specs=pl.BlockSpec((C_IN, NL), lambda i: (0, 0)),
        ),
    )(a2, r2, w_cat, w_cat_t)

    # Unfold lanes back to (N, C_in, L).
    return jnp.transpose(out2.reshape(C_IN, N, L), (1, 0, 2))


def lrp_conv1d_ref(a, r, w):
    """Pure-JAX reference mirroring the PyTorch autograd semantics."""
    w_plus = jnp.clip(w, 0.0, None)
    conv = lambda x: jax.lax.conv_general_dilated(
        x, w_plus, window_strides=(1,), padding=[(PAD, PAD)],
        dimension_numbers=('NCH', 'OIH', 'NCH'))
    z = conv(a) + EPS
    s = r / z
    _, vjp = jax.vjp(conv, a)          # d/da sum(conv(a) * s) with s held constant
    c = vjp(s)[0]
    return a * c


if __name__ == "__main__":
    key = jax.random.PRNGKey(0)
    ka, kr, kw = jax.random.split(key, 3)

    a = jax.random.normal(ka, (N, C_IN, L), dtype=jnp.float32)
    r = jax.random.normal(kr, (N, C_OUT, L), dtype=jnp.float32)
    # Raw Conv1d(C_in, C_out, kernel_size=K) weight; z_plus clamp happens inside both paths.
    w = jax.random.normal(kw, (C_OUT, C_IN, K), dtype=jnp.float32)

    out = jax.block_until_ready(lrp_conv1d(a, r, w))
    ref = jax.block_until_ready(lrp_conv1d_ref(a, r, w))

    assert out.shape == (N, C_IN, L)
    err = jnp.max(jnp.abs(out - ref))
    assert jnp.allclose(out, ref, atol=1e-4, rtol=1e-4), f"mismatch: max abs err {err}"
    print("KERNEL_OK")
</pallas_src>

<mosaic_0001>
module attributes {stable_mosaic.version = 11 : i64} {
  func.func @lrp_conv1d_kernel(%arg0: i32, %arg1: memref<4x32xf32, #tpu.memory_space<vmem>>, %arg2: memref<8x32xf32, #tpu.memory_space<vmem>>, %arg3: memref<8x12xf32, #tpu.memory_space<vmem>>, %arg4: memref<12x8xf32, #tpu.memory_space<vmem>>, %arg5: memref<4x32xf32, #tpu.memory_space<vmem>>) attributes {dimension_semantics = [#tpu.dimension_semantics<arbitrary>], iteration_bounds = array<i64: 1>, scalar_prefetch = 0 : i64, scratch_operands = 0 : i64, tpu.core_type = #tpu.core_type<tc>, window_params = [{pipeline_mode = #tpu.pipeline_mode<synchronous>, transform_indices = @transform_0, window_bounds = array<i64: 4, 32>}, {pipeline_mode = #tpu.pipeline_mode<synchronous>, transform_indices = @transform_1, window_bounds = array<i64: 8, 32>}, {pipeline_mode = #tpu.pipeline_mode<synchronous>, transform_indices = @transform_2, window_bounds = array<i64: 8, 12>}, {pipeline_mode = #tpu.pipeline_mode<synchronous>, transform_indices = @transform_3, window_bounds = array<i64: 12, 8>}, {pipeline_mode = #tpu.pipeline_mode<synchronous>, transform_indices = @transform_4, window_bounds = array<i64: 4, 32>}]} {
    %c0 = arith.constant 0 : index
    %c0_0 = arith.constant 0 : index
    %0 = vector.load %arg1[%c0, %c0_0] : memref<4x32xf32, #tpu.memory_space<vmem>>, vector<4x32xf32>
    %c0_1 = arith.constant 0 : index
    %c0_2 = arith.constant 0 : index
    %1 = vector.load %arg2[%c0_1, %c0_2] : memref<8x32xf32, #tpu.memory_space<vmem>>, vector<8x32xf32>
    %c0_3 = arith.constant 0 : index
    %c0_4 = arith.constant 0 : index
    %2 = vector.load %arg3[%c0_3, %c0_4] : memref<8x12xf32, #tpu.memory_space<vmem>>, vector<8x12xf32>
    %c0_5 = arith.constant 0 : index
    %c0_6 = arith.constant 0 : index
    %3 = vector.load %arg4[%c0_5, %c0_6] : memref<12x8xf32, #tpu.memory_space<vmem>>, vector<12x8xf32>
    %cst = arith.constant 0.000000e+00 : f32
    %4 = vector.broadcast %cst : f32 to vector<4x1xf32>
    %5 = tpu.iota {dimensions = array<i32: 1>} : vector<4x32xi32>
    %c16_i32 = arith.constant 16 : i32
    %c0_i32 = arith.constant 0 : i32
    %6 = arith.cmpi eq, %c16_i32, %c0_i32 : i32
    %c1_i32 = arith.constant 1 : i32
    %7 = arith.select %6, %c1_i32, %c16_i32 : i32
    %8 = vector.broadcast %7 : i32 to vector<4x32xi32>
    %9 = arith.remsi %5, %8 : vector<4x32xi32>
    %c0_i32_7 = arith.constant 0 : i32
    %10 = vector.broadcast %c0_i32_7 : i32 to vector<4x32xi32>
    %11 = arith.cmpi ne, %9, %10 : vector<4x32xi32>
    %c0_i32_8 = arith.constant 0 : i32
    %12 = vector.broadcast %c0_i32_8 : i32 to vector<4x32xi32>
    %13 = arith.cmpi slt, %9, %12 : vector<4x32xi32>
    %c0_i32_9 = arith.constant 0 : i32
    %14 = arith.cmpi slt, %7, %c0_i32_9 : i32
    %15 = vector.broadcast %14 : i1 to vector<4x32xi1>
    %16 = vector.broadcast %15 : vector<4x32xi1> to vector<4x32xi1>
    %17 = arith.xori %13, %16 : vector<4x32xi1>
    %18 = arith.andi %17, %11 : vector<4x32xi1>
    %19 = vector.broadcast %7 : i32 to vector<4x32xi32>
    %20 = arith.addi %9, %19 : vector<4x32xi32>
    %21 = arith.select %18, %20, %9 : vector<4x32xi1>, vector<4x32xi32>
    %c0_i32_10 = arith.constant 0 : i32
    %22 = vector.broadcast %c0_i32_10 : i32 to vector<4x32xi32>
    %23 = arith.cmpi ne, %21, %22 : vector<4x32xi32>
    %c15_i32 = arith.constant 15 : i32
    %24 = vector.broadcast %c15_i32 : i32 to vector<4x32xi32>
    %25 = arith.cmpi ne, %21, %24 : vector<4x32xi32>
    %26 = vector.extract_strided_slice %0 {offsets = [0, 0], sizes = [4, 31], strides = [1, 1]} : vector<4x32xf32> to vector<4x31xf32>
    %27 = tpu.concatenate %4, %26 in 1 : vector<4x1xf32>, vector<4x31xf32> -> vector<4x32xf32>
    %cst_11 = arith.constant 0.000000e+00 : f32
    %28 = vector.broadcast %cst_11 : f32 to vector<4x32xf32>
    %29 = arith.select %23, %27, %28 : vector<4x32xi1>, vector<4x32xf32>
    %30 = vector.extract_strided_slice %0 {offsets = [0, 1], sizes = [4, 31], strides = [1, 1]} : vector<4x32xf32> to vector<4x31xf32>
    %31 = tpu.concatenate %30, %4 in 1 : vector<4x31xf32>, vector<4x1xf32> -> vector<4x32xf32>
    %cst_12 = arith.constant 0.000000e+00 : f32
    %32 = vector.broadcast %cst_12 : f32 to vector<4x32xf32>
    %33 = arith.select %25, %31, %32 : vector<4x32xi1>, vector<4x32xf32>
    %34 = tpu.concatenate %29, %0, %33 in 0 : vector<4x32xf32>, vector<4x32xf32>, vector<4x32xf32> -> vector<12x32xf32>
    %cst_13 = arith.constant dense<0.000000e+00> : vector<8x32xf32>
    %35 = tpu.matmul %2, %34, %cst_13 {dimension_numbers = #tpu.dot_dimension_numbers<[1], [0], [0], [1], [0, 0, 1, 1], [], []>} : vector<8x12xf32>, vector<12x32xf32>, vector<8x32xf32> -> vector<8x32xf32>
    %cst_14 = arith.constant 9.99999974E-6 : f32
    %36 = vector.broadcast %cst_14 : f32 to vector<8x32xf32>
    %37 = arith.addf %35, %36 : vector<8x32xf32>
    %38 = arith.divf %1, %37 : vector<8x32xf32>
    %cst_15 = arith.constant dense<0.000000e+00> : vector<12x32xf32>
    %39 = tpu.matmul %3, %38, %cst_15 {dimension_numbers = #tpu.dot_dimension_numbers<[1], [0], [0], [1], [0, 0, 1, 1], [], []>} : vector<12x8xf32>, vector<8x32xf32>, vector<12x32xf32> -> vector<12x32xf32>
    %40 = vector.extract_strided_slice %39 {offsets = [0, 0], sizes = [4, 32], strides = [1, 1]} : vector<12x32xf32> to vector<4x32xf32>
    %41 = vector.extract_strided_slice %39 {offsets = [4, 0], sizes = [4, 32], strides = [1, 1]} : vector<12x32xf32> to vector<4x32xf32>
    %42 = vector.extract_strided_slice %39 {offsets = [8, 0], sizes = [4, 32], strides = [1, 1]} : vector<12x32xf32> to vector<4x32xf32>
    %43 = vector.extract_strided_slice %40 {offsets = [0, 1], sizes = [4, 31], strides = [1, 1]} : vector<4x32xf32> to vector<4x31xf32>
    %44 = tpu.concatenate %43, %4 in 1 : vector<4x31xf32>, vector<4x1xf32> -> vector<4x32xf32>
    %cst_16 = arith.constant 0.000000e+00 : f32
    %45 = vector.broadcast %cst_16 : f32 to vector<4x32xf32>
    %46 = arith.select %25, %44, %45 : vector<4x32xi1>, vector<4x32xf32>
    %47 = arith.addf %46, %41 : vector<4x32xf32>
    %48 = vector.extract_strided_slice %42 {offsets = [0, 0], sizes = [4, 31], strides = [1, 1]} : vector<4x32xf32> to vector<4x31xf32>
    %49 = tpu.concatenate %4, %48 in 1 : vector<4x1xf32>, vector<4x31xf32> -> vector<4x32xf32>
    %cst_17 = arith.constant 0.000000e+00 : f32
    %50 = vector.broadcast %cst_17 : f32 to vector<4x32xf32>
    %51 = arith.select %23, %49, %50 : vector<4x32xi1>, vector<4x32xf32>
    %52 = arith.addf %47, %51 : vector<4x32xf32>
    %53 = arith.mulf %0, %52 : vector<4x32xf32>
    %c0_18 = arith.constant 0 : index
    %c0_19 = arith.constant 0 : index
    %54 = vector.load %arg5[%c0_18, %c0_19] : memref<4x32xf32, #tpu.memory_space<vmem>>, vector<4x32xf32>
    tpu.vector_store %arg5[%c0_18, %c0_19], %53 {strides = array<i32>} : memref<4x32xf32, #tpu.memory_space<vmem>>, vector<4x32xf32>,
    return
  }
  func.func @transform_0(%arg0: i32) -> (i32, i32) {
    %c0_i32 = arith.constant 0 : i32
    %c0_i32_0 = arith.constant 0 : i32
    %c0_i32_1 = arith.constant 0 : i32
    return %c0_i32, %c0_i32_0 : i32, i32
  }
  func.func @transform_1(%arg0: i32) -> (i32, i32) {
    %c0_i32 = arith.constant 0 : i32
    %c0_i32_0 = arith.constant 0 : i32
    %c0_i32_1 = arith.constant 0 : i32
    return %c0_i32, %c0_i32_0 : i32, i32
  }
  func.func @transform_2(%arg0: i32) -> (i32, i32) {
    %c0_i32 = arith.constant 0 : i32
    %c0_i32_0 = arith.constant 0 : i32
    %c0_i32_1 = arith.constant 0 : i32
    return %c0_i32, %c0_i32_0 : i32, i32
  }
  func.func @transform_3(%arg0: i32) -> (i32, i32) {
    %c0_i32 = arith.constant 0 : i32
    %c0_i32_0 = arith.constant 0 : i32
    %c0_i32_1 = arith.constant 0 : i32
    return %c0_i32, %c0_i32_0 : i32, i32
  }
  func.func @transform_4(%arg0: i32) -> (i32, i32) {
    %c0_i32 = arith.constant 0 : i32
    %c0_i32_0 = arith.constant 0 : i32
    %c0_i32_1 = arith.constant 0 : i32
    return %c0_i32, %c0_i32_0 : i32, i32
  }
}

</mosaic_0001>

<llo_original>
// kernel: tpu_custom_call.1
$region0: #{tpu_custom_call.1}
  #allocation0 [shape = 'u32[]', space=smem, size = 0x4, offset = 0x4, fixed_abs, tag = 'smem constant byte address 0x4 - core index']
  #allocation1 [shape = 'u32[72,128]{1,0:T(1,128)}', space=vmem, size = 0x9000, scoped, tag = 'internal scratch']
  %s0 = inlined_call_operand.vmem [shape: f32[4,32], index: 0, kind: input, shape index: {}]
  %s1 = inlined_call_operand.vmem [shape: f32[8,32], index: 1, kind: input, shape index: {}]
  %s2 = inlined_call_operand.vmem [shape: f32[8,12], index: 2, kind: input, shape index: {}]
  %s3 = inlined_call_operand.vmem [shape: f32[12,8], index: 3, kind: input, shape index: {}]
  %s4 = inlined_call_operand.hbm [shape: f32[4,32], index: 4, kind: output, shape index: {}]
  %s5 = sld [smem:[#allocation0]]
  $region26: #{tpu_custom_call.1} parent=0
    _
  %s7 = ssub.s32 1, %s5
  %s8 = scalar_select 0, %s7, %s5
  $region1: #{tpu_custom_call.1} parent=0
    #allocation2 [shape = 'u8[2048]{0}', space=vmem, size = 0x800, scoped, tag = 'output window, operand 0, single buffered']
    #allocation3 [shape = 's32[1]{0}', space=sflag, size = 0x4, scoped, tag = 'scoped memory for tpu_custom_call.1']
    %9 = vsyncpa [#allocation3], 0
    // Predicated region
    $region2: #{tpu_custom_call.1} parent=1 // pred_check
      _
    $region3: #{tpu_custom_call.1} parent=1 // pred_check_branch
      %11 = sbr.rel (0) target = $region5
    $region4: #{tpu_custom_call.1} parent=1 // pred_region
      _
    $region5: #{tpu_custom_call.1} parent=1 // pred_fallthru
      _
    // Predicated region
    $region6: #{tpu_custom_call.1} parent=1 // pred_check
      _
    $region7: #{tpu_custom_call.1} parent=1 // pred_check_branch
      %13 = sbr.rel (0) target = $region9
    $region8: #{tpu_custom_call.1} parent=1 // pred_region
      _
    $region9: #{tpu_custom_call.1} parent=1 // pred_fallthru
      _
    // Predicated region
    $region10: #{tpu_custom_call.1} parent=1 // pred_check
      _
    $region11: #{tpu_custom_call.1} parent=1 // pred_check_branch
      %15 = sbr.rel (0) target = $region13
    $region12: #{tpu_custom_call.1} parent=1 // pred_region
      _
    $region13: #{tpu_custom_call.1} parent=1 // pred_fallthru
      _
    // Predicated region
    $region14: #{tpu_custom_call.1} parent=1 // pred_check
      _
    $region15: #{tpu_custom_call.1} parent=1 // pred_check_branch
      %17 = sbr.rel (0) target = $region17
    $region16: #{tpu_custom_call.1} parent=1 // pred_region
      _
    $region17: #{tpu_custom_call.1} parent=1 // pred_fallthru
      _
    %v18 = vld [vmem:[%s0] sm:$0xf]
    %v19 = vld [vmem:[%s1] sm:$0xff]
    %v20 = vld [vmem:[%s2] sm:$0xff]
    %v21 = vld [vmem:[%s3] sm:$0xff]
    %v22 = vld [vmem:[%s3 + $0x8] sm:$0xf]
    %v23 = vlaneseq
    %v24 = vand.u32 %v23, 127
    %vm25 = vcmp.lt.s32.totalorder %v24, 0
    %v26 = vsub.s32 0, %v24
    %v27 = vsel %vm25, %v26, %v24
    %v28 = vshrl.u32 %v27, 4
    %v29 = vand.u32 %v27, 15
    %v30 = vsub.s32 0, %v29
    %v31 = vsel %vm25, %v30, %v29
    %vm32 = vcmp.ne.s32.totalorder %v31, 0
    %vm33 = vcmp.lt.s32.totalorder %v31, 0
    %vm34 = vmand %vm33, %vm32
    %v35 = vadd.s32 %v31, 16
    %v36 = vsel %vm34, %v35, %v31
    %vm37 = vcmp.ne.s32.totalorder %v36, 0
    %vm38 = vcmp.ne.s32.totalorder %v36, 15
    %40 = vrot.lane.b32.xlu0 %v18, 1
    %v41 = vpop.permute.xlu0 %40
    %vm43 = vcmask 7168
    %v44 = vsel %vm43, 0.0, %v41
    %v45 = vsel %vm37, %v44, 0.0
    %46 = vrot.lane.b32.xlu0 %v18, 127
    %v47 = vpop.permute.xlu0 %46
    %vm49 = vcmask 252928
    %v50 = vsel %vm49, %v47, 0.0
    %v51 = vsel %vm38, %v50, 0.0
    %v52 = vrot.slane %v18, 4
    %vm54 = vcmask 1043456
    %v55 = vsel %vm54, %v45, %v52
    %vm56 = vcmask 97280
    %v58 = vsel %vm56, %v20, 0
    %v61 = vsel %vm54, %v51, 0
    %63 = vmatpush.msra.mxu0 0.0
    %64 = vmatpush.msra.mxu0 0.0
    %65 = vmatpush.msra.mxu0 0.0
    %66 = vmatpush.msra.mxu0 0.0
    %67 = vmatpush.msra.mxu0 0.0
    %68 = vmatpush.msra.mxu0 0.0
    %69 = vmatpush.msra.mxu0 0.0
    %70 = vmatpush.msra.mxu0 0.0
    %71 = vmatpush.msra.mxu0 0.0
    %72 = vmatpush.msra.mxu0 0.0
    %73 = vmatpush.msra.mxu0 0.0
    %74 = vmatpush.msra.mxu0 0.0
    %75 = vmatpush.msra.mxu0 0.0
    %76 = vmatpush.msra.mxu0 0.0
    %77 = vmatpush.msra.mxu0 %v61
    %78 = vmatpush.msra.mxu0 %v55
    %79 = vmatmul.f32.gmra.mxu0 %v58
    %v80 = vpop.f32.mrf.mxu0
    %v81 = vadd.f32 1e-05, %v80
    %82 = vdwg.mxu0
    %v83 = vrcp.pop %v81
    %v84 = vmul.f32 %v81, %v83
    %v85 = vsub.f32 1.0, %v84
    %v86 = vmul.f32 %v83, %v85
    %v87 = vadd.f32 %v83, %v86
    %vm88 = vweird.f32 %v81
    %vm89 = vweird.f32 %v83
    %vm90 = vmor %vm88, %vm89
    %v91 = vsel %vm90, %v83, %v87
    %v92 = vand.u32 2147483647, %v81
    %vm93 = vcmp.eq.f32.partialorder %v92, 8.507059e+37
    %v94 = vand.u32 %v81, 2147483648
    %v95 = vor.u32 1.1754944e-38, %v94
    %v96 = vsel %vm93, %v95, %v91
    %v97 = vmul.f32 %v19, %v96
    %vm98 = vcmask 64512
    %v100 = vsel %vm98, %v21, 0
    %v103 = vsel %vm98, %v22, 0
    %105 = vmatpush.msra.mxu0 0.0
    %106 = vmatpush.msra.mxu0 0.0
    %107 = vmatpush.msra.mxu0 0.0
    %108 = vmatpush.msra.mxu0 0.0
    %109 = vmatpush.msra.mxu0 0.0
    %110 = vmatpush.msra.mxu0 0.0
    %111 = vmatpush.msra.mxu0 0.0
    %112 = vmatpush.msra.mxu0 0.0
    %113 = vmatpush.msra.mxu0 0.0
    %114 = vmatpush.msra.mxu0 0.0
    %115 = vmatpush.msra.mxu0 0.0
    %116 = vmatpush.msra.mxu0 0.0
    %117 = vmatpush.msra.mxu0 0.0
    %118 = vmatpush.msra.mxu0 0.0
    %119 = vmatpush.msra.mxu0 0.0
    %120 = vmatpush.msra.mxu0 %v97
    %121 = vmatmul.f32.gmra.mxu0 %v100
    %v122 = vpop.f32.mrf.mxu0
    %v123 = vadd.f32 0.0, %v122
    %124 = vmatmul.f32.gmra.mxu0 %v103
    %v125 = vpop.f32.mrf.mxu0
    %v126 = vadd.f32 0.0, %v125
    %127 = vdwg.mxu0
    %129 = vrot.lane.b32.xlu0 %v123, 127
    %v130 = vpop.permute.xlu0 %129
    %v132 = vsel %vm49, %v130, 0.0
    %v133 = vsel %vm38, %v132, 0.0
    %v134 = vrot.slane %v123, 4
    %v136 = vadd.f32 %v133, %v134
    %138 = vrot.lane.b32.xlu0 %v126, 1
    %v139 = vpop.permute.xlu0 %138
    %v141 = vsel %vm43, 0.0, %v139
    %v142 = vsel %vm37, %v141, 0.0
    %v143 = vadd.f32 %v136, %v142
    %v144 = vmul.f32 %v18, %v143
    %vm145 = vcmask 257024
    %146 = vst.msk [vmem:[#allocation2] sm:$0xf] %vm145, %v144
    // Predicated region
    $region18: #{tpu_custom_call.1} parent=1 // pred_check
      _
    $region19: #{tpu_custom_call.1} parent=1 // pred_check_branch
      %148 = sbr.rel (0) target = $region21
    $region20: #{tpu_custom_call.1} parent=1 // pred_region
      %150 = vsyncadd [#allocation3], 0
      %s152 = sshll.u32 [#allocation2], 4
      %s153 = int_to_ptr.vmem [resolvable:$true] %s152
      %s154 = sshll.u32 %s4, 4
      %s155 = int_to_ptr.hbm [resolvable:$true] %s154
      %157 = dma.vmem_to_hbm [thread:$0]  %s153, 64, %s155, [#allocation3]
    $region21: #{tpu_custom_call.1} parent=1 // pred_fallthru
      _
    // Predicated region
    $region22: #{tpu_custom_call.1} parent=1 // pred_check
      _
    $region23: #{tpu_custom_call.1} parent=1 // pred_check_branch
      %159 = sbr.rel (0) target = $region25
    $region24: #{tpu_custom_call.1} parent=1 // pred_region
      %161 = dma.done [#allocation3], 64
    $region25: #{tpu_custom_call.1} parent=1 // pred_fallthru
      _
    %162 = vsyncpa [#allocation3], 1

</llo_original>
